<compile_context>
chip_gen: v5e
topology: v5e:2x2
jax: 0.10.0
libtpu: 0.0.40
codegen_flags: <defaults>
</compile_context>

<pallas_src>
import math

import jax
import jax.numpy as jnp
from jax.experimental import pallas as pl
from jax.experimental.pallas import tpu as pltpu


# ---------------------------------------------------------------------------
# Kernels
# ---------------------------------------------------------------------------
def _dense_packed_kernel(x_ref, w_ref, b_ref, o_ref):
    # x_ref: (TB, G*N) VMEM -- G examples packed per lane-dense row (streamed)
    # w_ref: (G*N, G)  VMEM -- block-diagonal weight (resident across steps)
    # b_ref: (1, 1)    SMEM -- scalar bias
    # o_ref: (TB, G)   VMEM -- lane-dense output tile
    acc = jnp.dot(x_ref[...], w_ref[...], preferred_element_type=jnp.float32)
    o_ref[...] = (acc + b_ref[0, 0]).astype(o_ref.dtype)


def _dense_reduce_kernel(x_ref, w_ref, b_ref, o_ref):
    # Fallback path: VPU broadcast-multiply + XLU cross-lane reduce (no MXU
    # width-1 matvec).  x_ref: (TB, N), w_ref: (1, N), o_ref: (TB, 1).
    prod = x_ref[...].astype(jnp.float32) * w_ref[...].astype(jnp.float32)
    acc = jnp.sum(prod, axis=-1, keepdims=True)
    o_ref[...] = (acc + b_ref[0, 0]).astype(o_ref.dtype)


# ---------------------------------------------------------------------------
# Helpers
# ---------------------------------------------------------------------------
def _sublane_multiple(itemsize):
    # (8,128) tile for 4-byte, (16,128) for 2-byte, (32,128) for 1-byte dtypes.
    return {4: 8, 2: 16, 1: 32}.get(itemsize, 8)


def _choose_group(B, N, max_group=128, max_w_bytes=2 << 20):
    """Largest G with (G*N) % 128 == 0, B % G == 0, G <= 128 and a small
    block-diagonal weight.  Returns None if no packing is possible."""
    p = 128 // math.gcd(N, 128)          # == lcm(N, 128) // N
    best = None
    g = p
    while g <= min(max_group, B):
        if B % g == 0 and (g * N) * g * 4 <= max_w_bytes:
            best = g
        g += p
    return best


def _vmem_limit_bytes():
    # Generation-aware VMEM limit: ~48 MiB on v7x (64 MiB physical),
    # ~96 MiB on v5e / v6e (128 MiB physical).
    try:
        cap = int(pltpu.get_tpu_info().vmem_capacity_bytes)
    except Exception:
        cap = 64 << 20                   # conservative fallback (v7x-safe)
    return max(32 << 20, min(cap * 3 // 4, 96 << 20))


# ---------------------------------------------------------------------------
# Forward
# ---------------------------------------------------------------------------
def dense_forward(x, weight, bias, *, target_tile_bytes=8 << 20):
    """Forward of the PyTorch `Dense` module.

    x: (B, N), weight: (1, N), bias: (1,)  ->  (B, 1) == x @ weight.T + bias
    """
    B, N = x.shape
    assert weight.shape == (1, N)
    bias2d = jnp.asarray(bias, jnp.float32).reshape(1, 1)

    g = _choose_group(B, N)
    use_packed = g is not None and g > 1

    if use_packed:
        rows, lane_w, out_w = B // g, g * N, g
        x_in = x.reshape(rows, lane_w)
        # (G*N, G) block-diagonal weight: full, lane-dense MXU contraction.
        # <= 2 MiB; under jit this folds/fuses with the (tiny) weight param.
        w_in = jnp.kron(jnp.eye(g, dtype=weight.dtype), weight.reshape(N, 1))
        kernel = _dense_packed_kernel
    else:
        rows, lane_w, out_w = B, N, 1
        x_in, w_in = x, weight
        kernel = _dense_reduce_kernel

    itemsize = x.dtype.itemsize
    sub = _sublane_multiple(itemsize)
    row_bytes = lane_w * itemsize
    out_row_bytes = out_w * itemsize
    w_bytes = w_in.size * w_in.dtype.itemsize
    vmem_limit = _vmem_limit_bytes()

    # Tile rows: ~8 MiB per streamed input buffer amortizes per-step overhead;
    # clamp so 2 input + 2 output pipeline buffers + the resident weight fit
    # under the (generation-aware) VMEM limit.
    tb = max(sub, target_tile_bytes // row_bytes)
    per_row = 2 * (row_bytes + out_row_bytes)
    avail = max(per_row * sub, vmem_limit - w_bytes - (1 << 20))
    tb = min(tb, max(sub, avail // per_row))
    tb = min(tb, rows)
    # v7x megacore: keep at least 2 balanced grid steps when there is work.
    if rows >= 2 * sub:
        half = -(-((rows + 1) // 2) // sub) * sub
        tb = min(tb, half)
    if tb < rows:
        tb = max(sub, (tb // sub) * sub)
    grid = (pl.cdiv(rows, tb),)

    cost = pl.CostEstimate(
        flops=2 * rows * lane_w * out_w,
        transcendentals=0,
        bytes_accessed=(rows * lane_w + rows * out_w) * itemsize
        + w_bytes
        + bias2d.size * 4,
    )

    out = pl.pallas_call(
        kernel,
        out_shape=jax.ShapeDtypeStruct((rows, out_w), x.dtype),
        grid_spec=pltpu.PrefetchScalarGridSpec(
            num_scalar_prefetch=0,
            grid=grid,
            in_specs=[
                # streamed batch tiles (double-buffered by the pipeline)
                pl.BlockSpec((tb, lane_w), lambda i: (i, 0)),
                # weight stays VMEM-resident across all grid steps
                pl.BlockSpec(w_in.shape, lambda i: (0, 0)),
                # scalar bias in SMEM
                pl.BlockSpec(memory_space=pltpu.SMEM),
            ],
            out_specs=pl.BlockSpec((tb, out_w), lambda i: (i, 0)),
        ),
        compiler_params=pltpu.CompilerParams(
            dimension_semantics=("parallel",),   # megacore split on v7x
            vmem_limit_bytes=vmem_limit,
        ),
        cost_estimate=cost,
    )(x_in, w_in, bias2d)

    return out.reshape(B, 1)


# ---------------------------------------------------------------------------
# Self-test
# ---------------------------------------------------------------------------
if __name__ == "__main__":
    key = jax.random.PRNGKey(0)
    keys = jax.random.split(key, 9)

    def make_case(kw, kb, kx, n, b):
        bound = 1.0 / float(n) ** 0.5
        w = jax.random.uniform(kw, (1, n), jnp.float32, -bound, bound)
        bi = jax.random.uniform(kb, (1,), jnp.float32, -bound, bound)
        x = jax.random.normal(kx, (b, n), jnp.float32)
        return x, w, bi

    # 1) the module's natural small shape (packed MXU path, single tile)
    x, w, b = make_case(keys[0], keys[1], keys[2], n=32, b=8)
    out = jax.block_until_ready(dense_forward(x, w, b))
    ref = x @ w.T + b
    assert out.shape == (8, 1)
    assert jnp.allclose(out, ref, atol=1e-4, rtol=1e-4), "packed path mismatch"

    # 2) larger batch: 128-wide lane-dense packed output, 2-step parallel grid
    x, w, b = make_case(keys[3], keys[4], keys[5], n=32, b=4096)
    out = jax.block_until_ready(dense_forward(x, w, b))
    ref = x @ w.T + b
    assert out.shape == (4096, 1)
    assert jnp.allclose(out, ref, atol=1e-4, rtol=1e-4), "packed tiled mismatch"

    # 3) width that cannot pack (N=33): VPU/XLU reduce fallback, 2-step grid
    x, w, b = make_case(keys[6], keys[7], keys[8], n=33, b=32)
    out = jax.block_until_ready(dense_forward(x, w, b))
    ref = x @ w.T + b
    assert out.shape == (32, 1)
    assert jnp.allclose(out, ref, atol=1e-4, rtol=1e-4), "reduce path mismatch"

    print("KERNEL_OK")
</pallas_src>

<mosaic_0001>
module attributes {stable_mosaic.version = 11 : i64} {
  func.func @_dense_packed_kernel(%arg0: i32, %arg1: memref<1x256xf32, #tpu.memory_space<vmem>>, %arg2: memref<256x8xf32, #tpu.memory_space<vmem>>, %arg3: memref<1x1xf32, #tpu.memory_space<smem>>, %arg4: memref<1x8xf32, #tpu.memory_space<vmem>>) attributes {dimension_semantics = [#tpu.dimension_semantics<parallel>], iteration_bounds = array<i64: 1>, scalar_prefetch = 0 : i64, scratch_operands = 0 : i64, tpu.core_type = #tpu.core_type<tc>, window_params = [{transform_indices = @transform_0, window_bounds = array<i64: 1, 256>}, {pipeline_mode = #tpu.pipeline_mode<synchronous>, transform_indices = @transform_1, window_bounds = array<i64: 256, 8>}, {transform_indices = @transform_2, window_bounds = array<i64: 1, 1>}, {transform_indices = @transform_3, window_bounds = array<i64: 1, 8>}]} {
    %c0 = arith.constant 0 : index
    %c0_0 = arith.constant 0 : index
    %0 = vector.load %arg1[%c0, %c0_0] : memref<1x256xf32, #tpu.memory_space<vmem>>, vector<1x256xf32>
    %c0_1 = arith.constant 0 : index
    %c0_2 = arith.constant 0 : index
    %1 = vector.load %arg2[%c0_1, %c0_2] : memref<256x8xf32, #tpu.memory_space<vmem>>, vector<256x8xf32>
    %cst = arith.constant dense<0.000000e+00> : vector<1x8xf32>
    %2 = tpu.matmul %0, %1, %cst {dimension_numbers = #tpu.dot_dimension_numbers<[1], [0], [0], [1], [0, 0, 1, 1], [], []>} : vector<1x256xf32>, vector<256x8xf32>, vector<1x8xf32> -> vector<1x8xf32>
    %c0_3 = arith.constant 0 : index
    %c0_4 = arith.constant 0 : index
    %3 = memref.load %arg3[%c0_3, %c0_4] : memref<1x1xf32, #tpu.memory_space<smem>>
    %4 = vector.broadcast %3 : f32 to vector<1x8xf32>
    %5 = arith.addf %2, %4 : vector<1x8xf32>
    %c0_5 = arith.constant 0 : index
    %c0_6 = arith.constant 0 : index
    %6 = vector.load %arg4[%c0_5, %c0_6] : memref<1x8xf32, #tpu.memory_space<vmem>>, vector<1x8xf32>
    tpu.vector_store %arg4[%c0_5, %c0_6], %5 {strides = array<i32>} : memref<1x8xf32, #tpu.memory_space<vmem>>, vector<1x8xf32>,
    return
  }
  func.func @transform_0(%arg0: i32) -> (i32, i32) {
    %c0_i32 = arith.constant 0 : i32
    %c0_i32_0 = arith.constant 0 : i32
    return %arg0, %c0_i32 : i32, i32
  }
  func.func @transform_1(%arg0: i32) -> (i32, i32) {
    %c0_i32 = arith.constant 0 : i32
    %c0_i32_0 = arith.constant 0 : i32
    %c0_i32_1 = arith.constant 0 : i32
    return %c0_i32, %c0_i32_0 : i32, i32
  }
  func.func @transform_2(%arg0: i32) -> (i32, i32) {
    %c0_i32 = arith.constant 0 : i32
    %c0_i32_0 = arith.constant 0 : i32
    %c0_i32_1 = arith.constant 0 : i32
    return %c0_i32, %c0_i32_0 : i32, i32
  }
  func.func @transform_3(%arg0: i32) -> (i32, i32) {
    %c0_i32 = arith.constant 0 : i32
    %c0_i32_0 = arith.constant 0 : i32
    return %arg0, %c0_i32 : i32, i32
  }
}

</mosaic_0001>

<llo_original>
// kernel: tpu_custom_call.1
$region0: #{tpu_custom_call.1}
  #allocation0 [shape = 'u32[]', space=smem, size = 0x4, offset = 0x4, fixed_abs, tag = 'smem constant byte address 0x4 - core index']
  #allocation1 [shape = 'u32[72,128]{1,0:T(1,128)}', space=vmem, size = 0x9000, scoped, tag = 'internal scratch']
  #allocation2 [shape = 'f32[1,1]{1,0:T(1,128)S(6)}', space=smem, size = 0x200, scoped, tag = 'scoped memory for tpu_custom_call.1']
  %s0 = inlined_call_operand.vmem [shape: f32[1,256], index: 0, kind: input, shape index: {}]
  %s1 = inlined_call_operand.vmem [shape: f32[256,8], index: 1, kind: input, shape index: {}]
  %s2 = inlined_call_operand.<no memory space> [shape: f32[1,1], index: 2, kind: input, shape index: {}]
  %s3 = inlined_call_operand.hbm [shape: f32[1,8], index: 3, kind: output, shape index: {}]
  %s4 = sld [smem:[#allocation0]]
  $region22: #{tpu_custom_call.1} parent=0
    _
  %s6 = ssub.s32 1, %s4
  %s7 = scalar_select 0, %s6, %s4
  %8 = sst [smem:[#allocation2]] %s2
  $region1: #{tpu_custom_call.1} parent=0
    #allocation3 [shape = 'u8[512]{0}', space=vmem, size = 0x400, scoped, tag = 'output window, operand 0, single buffered']
    #allocation4 [shape = 's32[1]{0}', space=sflag, size = 0x4, scoped, tag = 'scoped memory for tpu_custom_call.1']
    %9 = vsyncpa [#allocation4], 0
    // Predicated region
    $region2: #{tpu_custom_call.1} parent=1 // pred_check
      _
    $region3: #{tpu_custom_call.1} parent=1 // pred_check_branch
      %11 = sbr.rel (0) target = $region5
    $region4: #{tpu_custom_call.1} parent=1 // pred_region
      _
    $region5: #{tpu_custom_call.1} parent=1 // pred_fallthru
      _
    // Predicated region
    $region6: #{tpu_custom_call.1} parent=1 // pred_check
      _
    $region7: #{tpu_custom_call.1} parent=1 // pred_check_branch
      %13 = sbr.rel (0) target = $region9
    $region8: #{tpu_custom_call.1} parent=1 // pred_region
      _
    $region9: #{tpu_custom_call.1} parent=1 // pred_fallthru
      _
    // Predicated region
    $region10: #{tpu_custom_call.1} parent=1 // pred_check
      _
    $region11: #{tpu_custom_call.1} parent=1 // pred_check_branch
      %15 = sbr.rel (0) target = $region13
    $region12: #{tpu_custom_call.1} parent=1 // pred_region
      _
    $region13: #{tpu_custom_call.1} parent=1 // pred_fallthru
      _
    %v16 = vld [vmem:[%s0] sm:$0x3]
    %v17 = vld [vmem:[%s1] sm:$0xff]
    %v18 = vld [vmem:[%s1 + $0x8] sm:$0xff]
    %v19 = vld [vmem:[%s1 + $0x10] sm:$0xff]
    %v20 = vld [vmem:[%s1 + $0x18] sm:$0xff]
    %v21 = vld [vmem:[%s1 + $0x20] sm:$0xff]
    %v22 = vld [vmem:[%s1 + $0x28] sm:$0xff]
    %v23 = vld [vmem:[%s1 + $0x30] sm:$0xff]
    %v24 = vld [vmem:[%s1 + $0x38] sm:$0xff]
    %v25 = vld [vmem:[%s1 + $0x40] sm:$0xff]
    %v26 = vld [vmem:[%s1 + $0x48] sm:$0xff]
    %v27 = vld [vmem:[%s1 + $0x50] sm:$0xff]
    %v28 = vld [vmem:[%s1 + $0x58] sm:$0xff]
    %v29 = vld [vmem:[%s1 + $0x60] sm:$0xff]
    %v30 = vld [vmem:[%s1 + $0x68] sm:$0xff]
    %v31 = vld [vmem:[%s1 + $0x70] sm:$0xff]
    %v32 = vld [vmem:[%s1 + $0x78] sm:$0xff]
    %v33 = vld [vmem:[%s1 + $0x80] sm:$0xff]
    %v34 = vld [vmem:[%s1 + $0x88] sm:$0xff]
    %v35 = vld [vmem:[%s1 + $0x90] sm:$0xff]
    %v36 = vld [vmem:[%s1 + $0x98] sm:$0xff]
    %v37 = vld [vmem:[%s1 + $0xa0] sm:$0xff]
    %v38 = vld [vmem:[%s1 + $0xa8] sm:$0xff]
    %v39 = vld [vmem:[%s1 + $0xb0] sm:$0xff]
    %v40 = vld [vmem:[%s1 + $0xb8] sm:$0xff]
    %v41 = vld [vmem:[%s1 + $0xc0] sm:$0xff]
    %v42 = vld [vmem:[%s1 + $0xc8] sm:$0xff]
    %v43 = vld [vmem:[%s1 + $0xd0] sm:$0xff]
    %v44 = vld [vmem:[%s1 + $0xd8] sm:$0xff]
    %v45 = vld [vmem:[%s1 + $0xe0] sm:$0xff]
    %v46 = vld [vmem:[%s1 + $0xe8] sm:$0xff]
    %v47 = vld [vmem:[%s1 + $0xf0] sm:$0xff]
    %v48 = vld [vmem:[%s1 + $0xf8] sm:$0xff]
    %s49 = sld [smem:[#allocation2]]
    %v50 = vstv %s49
    %v52 = vperm.slane %v16, 0
    %v53 = vperm.slane %v16, 1
    %56 = vmatpush.msra.mxu0 %v32
    %57 = vmatpush.msra.mxu0 %v31
    %58 = vmatpush.msra.mxu0 %v30
    %59 = vmatpush.msra.mxu0 %v29
    %60 = vmatpush.msra.mxu0 %v28
    %61 = vmatpush.msra.mxu0 %v27
    %62 = vmatpush.msra.mxu0 %v26
    %63 = vmatpush.msra.mxu0 %v25
    %64 = vmatpush.msra.mxu0 %v24
    %65 = vmatpush.msra.mxu0 %v23
    %66 = vmatpush.msra.mxu0 %v22
    %67 = vmatpush.msra.mxu0 %v21
    %68 = vmatpush.msra.mxu0 %v20
    %69 = vmatpush.msra.mxu0 %v19
    %70 = vmatpush.msra.mxu0 %v18
    %71 = vmatpush.msra.mxu0 %v17
    %72 = vmatmul.f32.gmra.mxu0 %v52
    %v73 = vpop.f32.mrf.mxu0
    %v74 = vadd.f32 %v50, %v73
    %75 = vdwg.mxu0
    %76 = vmatpush.msra.mxu0 %v48
    %77 = vmatpush.msra.mxu0 %v47
    %78 = vmatpush.msra.mxu0 %v46
    %79 = vmatpush.msra.mxu0 %v45
    %80 = vmatpush.msra.mxu0 %v44
    %81 = vmatpush.msra.mxu0 %v43
    %82 = vmatpush.msra.mxu0 %v42
    %83 = vmatpush.msra.mxu0 %v41
    %84 = vmatpush.msra.mxu0 %v40
    %85 = vmatpush.msra.mxu0 %v39
    %86 = vmatpush.msra.mxu0 %v38
    %87 = vmatpush.msra.mxu0 %v37
    %88 = vmatpush.msra.mxu0 %v36
    %89 = vmatpush.msra.mxu0 %v35
    %90 = vmatpush.msra.mxu0 %v34
    %91 = vmatpush.msra.mxu0 %v33
    %92 = vmatmul.f32.gmra.mxu0 %v53
    %v93 = vpop.f32.mrf.mxu0
    %v94 = vadd.f32 %v74, %v93
    %95 = vdwg.mxu0
    %vm96 = vcmask 57344
    %97 = vst.msk [vmem:[#allocation3] sm:$0x1] %vm96, %v94
    // Predicated region
    $region14: #{tpu_custom_call.1} parent=1 // pred_check
      _
    $region15: #{tpu_custom_call.1} parent=1 // pred_check_branch
      %99 = sbr.rel (0) target = $region17
    $region16: #{tpu_custom_call.1} parent=1 // pred_region
      %101 = vsyncadd [#allocation4], 0
      %s103 = sshll.u32 [#allocation3], 4
      %s104 = int_to_ptr.vmem [resolvable:$true] %s103
      %s105 = sshll.u32 %s3, 4
      %s106 = int_to_ptr.hbm [resolvable:$true] %s105
      %108 = dma.vmem_to_hbm [thread:$0]  %s104, 16, %s106, [#allocation4]
    $region17: #{tpu_custom_call.1} parent=1 // pred_fallthru
      _
    // Predicated region
    $region18: #{tpu_custom_call.1} parent=1 // pred_check
      _
    $region19: #{tpu_custom_call.1} parent=1 // pred_check_branch
      %110 = sbr.rel (0) target = $region21
    $region20: #{tpu_custom_call.1} parent=1 // pred_region
      %112 = dma.done [#allocation4], 16
    $region21: #{tpu_custom_call.1} parent=1 // pred_fallthru
      _
    %113 = vsyncpa [#allocation4], 1

</llo_original>
